<compile_context>
chip_gen: v7x
topology: tpu7x:2x2x1
jax: 0.10.0
libtpu: 0.0.40
codegen_flags: <defaults>
</compile_context>

<pallas_src>
import jax
import jax.numpy as jnp
from jax.experimental import pallas as pl
from jax.experimental.pallas import tpu as pltpu

_LANES = 128
_MAX_TILE_ROWS = 2048  # 2048 * 128 * 4 B = 1 MiB per output block


def _generator_kernel(param_ref, out_ref):
    # param_ref: (1, 1) f32 in SMEM; out_ref: (tile_rows, 128) f32 in VMEM.
    p = param_ref[0, 0]
    out_ref[...] = jnp.full(out_ref.shape, p, out_ref.dtype)


def generator_forward(parameter: jax.Array, noise: jax.Array) -> jax.Array:
    """parameter: [1, 1] f32, noise: [B, 1] f32 (values unused) -> [B, 1] f32."""
    batch = noise.shape[0]

    # Lane-dense padded output: (rows, 128) f32, tiled along rows for large B.
    rows_needed = max(1, pl.cdiv(batch, _LANES))
    if rows_needed <= _MAX_TILE_ROWS:
        tile_rows = rows_needed  # single block == full array dims (always legal)
        rows = rows_needed
    else:
        tile_rows = _MAX_TILE_ROWS
        rows = pl.cdiv(rows_needed, tile_rows) * tile_rows
    grid = (rows // tile_rows,)

    padded = pl.pallas_call(
        _generator_kernel,
        out_shape=jax.ShapeDtypeStruct((rows, _LANES), jnp.float32),
        grid_spec=pltpu.PrefetchScalarGridSpec(
            num_scalar_prefetch=0,
            grid=grid,
            in_specs=[
                # Single learnable scalar: keep it on the scalar path (SMEM).
                pl.BlockSpec(memory_space=pltpu.MemorySpace.SMEM),
            ],
            out_specs=pl.BlockSpec((tile_rows, _LANES), lambda i: (i, 0)),
        ),
        compiler_params=pltpu.CompilerParams(
            # Blocks are independent -> parallel lets v7x shard across both TCs.
            dimension_semantics=("parallel",),
        ),
        cost_estimate=pl.CostEstimate(
            flops=0,
            transcendentals=0,
            bytes_accessed=rows * _LANES * 4 + 4,
        ),
    )(parameter)

    # Every element equals the scalar, so slicing the padded slab back to the
    # PyTorch [B, 1] shape is semantically free.
    return padded.reshape(-1)[:batch].reshape(batch, 1)


if __name__ == "__main__":
    key = jax.random.PRNGKey(0)

    # Deterministic "weights": nn.Parameter(torch.ones(1, 1))
    parameter = jnp.ones((1, 1), dtype=jnp.float32)

    # Example input noise of shape [batch size, 1] (values ignored by forward)
    batch = 8
    noise = jax.random.normal(key, (batch, 1), dtype=jnp.float32)

    out = generator_forward(parameter, noise)
    out = jax.block_until_ready(out)

    # Reference: torch.repeat_interleave(parameter, repeats=B, dim=0)
    ref = jnp.repeat(parameter, repeats=batch, axis=0)
    assert out.shape == (batch, 1), out.shape
    assert out.dtype == jnp.float32, out.dtype
    assert jnp.allclose(out, ref), (out, ref)

    # Sanity-check a larger, multi-tile batch as well.
    big_batch = 5 * _MAX_TILE_ROWS * _LANES + 37
    big_noise = jnp.zeros((big_batch, 1), dtype=jnp.float32)
    param2 = jnp.full((1, 1), 3.5, dtype=jnp.float32)
    big_out = jax.block_until_ready(generator_forward(param2, big_noise))
    assert big_out.shape == (big_batch, 1)
    assert jnp.all(big_out == 3.5)

    print("KERNEL_OK")
</pallas_src>

<mosaic_0001>
module attributes {stable_mosaic.version = 11 : i64} {
  func.func @_generator_kernel(%arg0: i32, %arg1: memref<1x1xf32, #tpu.memory_space<smem>>, %arg2: memref<1x128xf32, #tpu.memory_space<vmem>>) attributes {dimension_semantics = [#tpu.dimension_semantics<parallel>], iteration_bounds = array<i64: 1>, scalar_prefetch = 0 : i64, scratch_operands = 0 : i64, tpu.core_type = #tpu.core_type<tc>, window_params = [{transform_indices = @transform_0, window_bounds = array<i64: 1, 1>}, {transform_indices = @transform_1, window_bounds = array<i64: 1, 128>}]} {
    %c0 = arith.constant 0 : index
    %c0_0 = arith.constant 0 : index
    %0 = memref.load %arg1[%c0, %c0_0] : memref<1x1xf32, #tpu.memory_space<smem>>
    %1 = vector.broadcast %0 : f32 to vector<1x128xf32>
    %c0_1 = arith.constant 0 : index
    %c0_2 = arith.constant 0 : index
    %2 = vector.load %arg2[%c0_1, %c0_2] : memref<1x128xf32, #tpu.memory_space<vmem>>, vector<1x128xf32>
    tpu.vector_store %arg2[%c0_1, %c0_2], %1 {strides = array<i32>} : memref<1x128xf32, #tpu.memory_space<vmem>>, vector<1x128xf32>,
    return
  }
  func.func @transform_0(%arg0: i32) -> (i32, i32) {
    %c0_i32 = arith.constant 0 : i32
    %c0_i32_0 = arith.constant 0 : i32
    %c0_i32_1 = arith.constant 0 : i32
    return %c0_i32, %c0_i32_0 : i32, i32
  }
  func.func @transform_1(%arg0: i32) -> (i32, i32) {
    %c0_i32 = arith.constant 0 : i32
    %c0_i32_0 = arith.constant 0 : i32
    return %arg0, %c0_i32 : i32, i32
  }
}

</mosaic_0001>

<llo_original>
// kernel: tpu_custom_call.1
$region0: #{tpu_custom_call.1}
  #allocation0 [shape = 'u32[]', space=smem, size = 0x4, offset = 0x4, fixed_abs, tag = 'smem constant byte address 0x4 - core index']
  #allocation1 [shape = 'u32[144,128]{1,0:T(1,128)}', space=vmem, size = 0x12000, scoped, tag = 'internal scratch']
  #allocation2 [shape = 'f32[1,1]{1,0:T(1,128)S(6)}', space=smem, size = 0x200, scoped, tag = 'scoped memory for tpu_custom_call.1']
  %s0 = inlined_call_operand.<no memory space> [shape: f32[1,1], index: 0, kind: input, shape index: {}]
  %s1 = inlined_call_operand.hbm [shape: f32[1,128], index: 1, kind: output, shape index: {}]
  %s2 = sld [smem:[#allocation0]]
  $region14: #{tpu_custom_call.1} parent=0
    _
  %s4 = ssub.s32 1, %s2
  %s5 = scalar_select 0, %s4, %s2
  %6 = sst [smem:[#allocation2]] %s0
  $region1: #{tpu_custom_call.1} parent=0
    #allocation3 [shape = 'u8[512]{0}', space=vmem, size = 0x400, scoped, tag = 'output window, operand 0, single buffered']
    #allocation4 [shape = 's32[1]{0}', space=sflag, size = 0x4, scoped, tag = 'scoped memory for tpu_custom_call.1']
    %7 = vsyncpa [#allocation4], 0
    // Predicated region
    $region2: #{tpu_custom_call.1} parent=1 // pred_check
      _
    $region3: #{tpu_custom_call.1} parent=1 // pred_check_branch
      %9 = sbr.rel (0) target = $region5
    $region4: #{tpu_custom_call.1} parent=1 // pred_region
      _
    $region5: #{tpu_custom_call.1} parent=1 // pred_fallthru
      _
    %s10 = sld [smem:[#allocation2]]
    %v11 = vstv %s10
    %12 = vst [vmem:[#allocation3] sm:$0x1] %v11
    // Predicated region
    $region6: #{tpu_custom_call.1} parent=1 // pred_check
      _
    $region7: #{tpu_custom_call.1} parent=1 // pred_check_branch
      %14 = sbr.rel (0) target = $region9
    $region8: #{tpu_custom_call.1} parent=1 // pred_region
      %s16 = ssub.s32 16, 16
      %17 = vsyncadd [#allocation4], %s16
      %s19 = sshll.u32 [#allocation3], 4
      %s20 = int_to_ptr.vmem [resolvable:$true] %s19
      %22 = dma.vmem_to_hbm [thread:$0]  %s20, 16, %s1, [#allocation4]
    $region9: #{tpu_custom_call.1} parent=1 // pred_fallthru
      _
    // Predicated region
    $region10: #{tpu_custom_call.1} parent=1 // pred_check
      _
    $region11: #{tpu_custom_call.1} parent=1 // pred_check_branch
      %24 = sbr.rel (0) target = $region13
    $region12: #{tpu_custom_call.1} parent=1 // pred_region
      %25 = dma.done [#allocation4], 16
    $region13: #{tpu_custom_call.1} parent=1 // pred_fallthru
      _
    %26 = vsyncpa [#allocation4], 1

</llo_original>
